<compile_context>
chip_gen: v6e
topology: v6e:2x2x1
jax: 0.10.0
libtpu: 0.0.40
codegen_flags: <defaults>
</compile_context>

<pallas_src>
import functools

import jax
import jax.numpy as jnp
import numpy as np
from jax import lax
from jax.experimental import pallas as pl
from jax.experimental.pallas import tpu as pltpu


def _trip_bin_kernel(feat_ref, hp_ref, distq_ref, loss_ref, *, k_way, margin):
    """One grid step == one bin."""
    x = feat_ref[0]                                   # [B, fd], native dtype
    B = x.shape[0]

    # --- torch.cdist(feat, feat) for this bin via one MXU contraction -------
    gram = jnp.einsum('if,jf->ij', x, x,
                      preferred_element_type=jnp.float32)        # [B, B] f32
    xf = x.astype(jnp.float32)
    sq = jnp.sum(xf * xf, axis=-1, keepdims=True)                # [B, 1]
    d2 = jnp.maximum(sq + sq.T - 2.0 * gram, 0.0)
    eye = (lax.broadcasted_iota(jnp.int32, (B, B), 0) ==
           lax.broadcasted_iota(jnp.int32, (B, B), 1))
    d2 = jnp.where(eye, 0.0, d2)                                 # exact 0 self-dist
    dist = jnp.sqrt(d2)                                          # [B, B]

    # --- triplet hinge: B^2-level pre-masking, single B^3 temporary ---------
    is_pos = hp_ref[...] > 0.0                                   # same label (incl. diag)
    big = jnp.float32(1e9)
    dp_m = jnp.where(is_pos, dist, -big)                         # invalid positives -> -inf-ish
    dn_m = jnp.where(is_pos, big, dist)                          # invalid negatives -> +inf-ish
    raw = jnp.maximum(jnp.float32(margin)
                      + dp_m[:, :, None] - dn_m[:, None, :], 0.0)  # [B, B, B]
    s = jnp.sum(raw)
    c = jnp.sum((raw > 0.0).astype(jnp.float32))
    # sum / max(count,1) == 0 when count == 0 (matches the reference semantics)
    loss_ref[...] = jnp.reshape(s / jnp.maximum(c, 1.0), (1, 1, 1))

    # --- per-bin query->support distance block (mean/softmax in wrapper) ----
    distq_ref[...] = dist[None, k_way:, :k_way]


def trip_forward(inpt, label_list, k_way, margin=0.2):
    """inpt: [bins, batch, fd] float; label_list: list of 1-D int arrays."""
    label = jnp.concatenate(label_list)
    bins, batch, fd = inpt.shape
    q_total = batch - k_way

    hp = (label[:, None] == label[None, :]).astype(jnp.float32)  # same-label mask

    kernel = functools.partial(_trip_bin_kernel, k_way=k_way, margin=float(margin))
    distq, loss_pb = pl.pallas_call(
        kernel,
        out_shape=(
            jax.ShapeDtypeStruct((bins, q_total, k_way), jnp.float32),
            jax.ShapeDtypeStruct((bins, 1, 1), jnp.float32),
        ),
        grid_spec=pltpu.PrefetchScalarGridSpec(
            num_scalar_prefetch=0,
            grid=(bins,),
            in_specs=[
                pl.BlockSpec((1, batch, fd), lambda b: (b, 0, 0)),
                pl.BlockSpec((batch, batch), lambda b: (0, 0)),
            ],
            out_specs=[
                pl.BlockSpec((1, q_total, k_way), lambda b: (b, 0, 0)),
                pl.BlockSpec((1, 1, 1), lambda b: (b, 0, 0)),
            ]),
        compiler_params=pltpu.CompilerParams(
            dimension_semantics=("parallel",)),   # bins sharded across TCs on v7x
    )(inpt, hp)   # native dtype: no wrapper-side f32 cast (halves DMA for bf16)

    # Tiny finalize in plain JAX, per review: per-bin partials out of the
    # parallel grid, mean over bins + softmax outside the kernel.
    loss = jnp.mean(loss_pb)
    y_pred = jax.nn.softmax(-jnp.mean(distq, axis=0), axis=1)
    return y_pred, loss


def _reference(inpt, label, k_way, margin):
    """Pure-JAX reference mirroring the PyTorch forward semantics."""
    bins, B, _ = inpt.shape
    diff = inpt[:, :, None, :] - inpt[:, None, :, :]
    dist = jnp.sqrt(jnp.maximum(jnp.sum(diff * diff, -1), 0.0))       # [bins,B,B]
    hp = (label[:, None] == label[None, :])
    hn = jnp.logical_not(hp)
    raw = jnp.maximum(margin + dist[:, :, :, None] - dist[:, :, None, :], 0.0)
    mask = (hp[None, :, :, None] & hn[None, :, None, :]).astype(jnp.float32)
    masked = raw * mask
    s = jnp.sum(masked.reshape(bins, -1), axis=1)
    cnt = jnp.sum((masked.reshape(bins, -1) != 0.0).astype(jnp.float32), axis=1)
    per = jnp.where(cnt == 0.0, 0.0, s / cnt)
    loss = jnp.mean(per)
    dq = dist[:, k_way:, :k_way]                                       # cdist(query, support)
    y = jax.nn.softmax(-jnp.mean(dq, axis=0), axis=1)
    return y, loss


if __name__ == "__main__":
    key = jax.random.PRNGKey(0)

    # Small episode: k_way=2, n_shot=1 (prototypes already aggregated), query=3/class.
    k_way, query = 2, 3
    bins, fd = 2, 32
    batch = k_way + k_way * query                     # 2 prototypes + 6 queries = 8

    inpt = jax.random.normal(key, (bins, batch, fd), dtype=jnp.float32)
    proto_labels = jnp.arange(k_way, dtype=jnp.int32)                      # [0, 1]
    query_labels = jnp.repeat(jnp.arange(k_way, dtype=jnp.int32), query)   # [0,0,0,1,1,1]
    label_list = [proto_labels, query_labels]

    y_pred, loss = trip_forward(inpt, label_list, k_way, margin=0.2)
    jax.block_until_ready((y_pred, loss))

    # correctness check against pure-JAX reference
    y_ref, l_ref = _reference(inpt, jnp.concatenate(label_list), k_way, 0.2)
    assert y_pred.shape == (batch - k_way, k_way)
    assert np.allclose(np.asarray(y_pred), np.asarray(y_ref), atol=1e-4, rtol=1e-4)
    assert np.allclose(float(loss), float(l_ref), atol=1e-4, rtol=1e-4)

    print("KERNEL_OK")
</pallas_src>

<mosaic_0001>
module attributes {stable_mosaic.version = 11 : i64} {
  func.func @_trip_bin_kernel(%arg0: i32, %arg1: memref<1x8x32xf32, #tpu.memory_space<vmem>>, %arg2: memref<8x8xf32, #tpu.memory_space<vmem>>, %arg3: memref<1x6x2xf32, #tpu.memory_space<vmem>>, %arg4: memref<1x1x1xf32, #tpu.memory_space<vmem>>) attributes {dimension_semantics = [#tpu.dimension_semantics<parallel>], iteration_bounds = array<i64: 2>, scalar_prefetch = 0 : i64, scratch_operands = 0 : i64, tpu.core_type = #tpu.core_type<tc>, window_params = [{transform_indices = @transform_0, window_bounds = array<i64: 1, 8, 32>}, {pipeline_mode = #tpu.pipeline_mode<synchronous>, transform_indices = @transform_1, window_bounds = array<i64: 8, 8>}, {transform_indices = @transform_2, window_bounds = array<i64: 1, 6, 2>}, {transform_indices = @transform_3, window_bounds = array<i64: 1, 1, 1>}]} {
    %c0 = arith.constant 0 : index
    %c0_0 = arith.constant 0 : index
    %c0_1 = arith.constant 0 : index
    %0 = vector.load %arg1[%c0, %c0_0, %c0_1] : memref<1x8x32xf32, #tpu.memory_space<vmem>>, vector<1x8x32xf32>
    %1 = vector.shape_cast %0 : vector<1x8x32xf32> to vector<8x32xf32>
    "tpu.trace_start"() <{level = 10 : i32, message = "if,jf->ij"}> : () -> ()
    %cst = arith.constant dense<0.000000e+00> : vector<8x8xf32>
    %2 = tpu.matmul %1, %1, %cst {dimension_numbers = #tpu.dot_dimension_numbers<[1], [1], [0], [0], [0, 0, 1, 0], [], []>} : vector<8x32xf32>, vector<8x32xf32>, vector<8x8xf32> -> vector<8x8xf32>
    "tpu.trace_stop"() : () -> ()
    %3 = arith.mulf %1, %1 : vector<8x32xf32>
    %cst_2 = arith.constant dense<0.000000e+00> : vector<8xf32>
    %4 = vector.multi_reduction <add>, %3, %cst_2 [1] : vector<8x32xf32> to vector<8xf32>
    %5 = vector.shape_cast %4 : vector<8xf32> to vector<8x1xf32>
    %6 = tpu.transpose %5, [1, 0] : vector<8x1xf32> -> vector<1x8xf32>
    %7 = vector.broadcast %5 : vector<8x1xf32> to vector<8x8xf32>
    %8 = vector.broadcast %6 : vector<1x8xf32> to vector<8x8xf32>
    %9 = arith.addf %7, %8 : vector<8x8xf32>
    %cst_3 = arith.constant 2.000000e+00 : f32
    %10 = vector.broadcast %cst_3 : f32 to vector<8x8xf32>
    %11 = arith.mulf %10, %2 : vector<8x8xf32>
    %12 = arith.subf %9, %11 : vector<8x8xf32>
    %cst_4 = arith.constant 0.000000e+00 : f32
    %13 = vector.broadcast %cst_4 : f32 to vector<8x8xf32>
    %14 = arith.maximumf %12, %13 : vector<8x8xf32>
    %15 = tpu.iota {dimensions = array<i32: 0>} : vector<8x8xi32>
    %16 = tpu.iota {dimensions = array<i32: 1>} : vector<8x8xi32>
    %17 = arith.cmpi eq, %15, %16 : vector<8x8xi32>
    %cst_5 = arith.constant 0.000000e+00 : f32
    %18 = vector.broadcast %cst_5 : f32 to vector<8x8xf32>
    %19 = arith.select %17, %18, %14 : vector<8x8xi1>, vector<8x8xf32>
    %20 = math.sqrt %19 : vector<8x8xf32>
    %c0_6 = arith.constant 0 : index
    %c0_7 = arith.constant 0 : index
    %21 = vector.load %arg2[%c0_6, %c0_7] : memref<8x8xf32, #tpu.memory_space<vmem>>, vector<8x8xf32>
    %cst_8 = arith.constant 0.000000e+00 : f32
    %22 = vector.broadcast %cst_8 : f32 to vector<8x8xf32>
    %23 = arith.cmpf ogt, %21, %22 : vector<8x8xf32>
    %cst_9 = arith.constant 0.000000e+00 : f32
    %cst_10 = arith.constant 1.000000e+09 : f32
    %24 = arith.subf %cst_9, %cst_10 : f32
    %25 = vector.broadcast %24 : f32 to vector<8x8xf32>
    %26 = arith.select %23, %20, %25 : vector<8x8xi1>, vector<8x8xf32>
    %cst_11 = arith.constant 1.000000e+09 : f32
    %27 = vector.broadcast %cst_11 : f32 to vector<8x8xf32>
    %28 = arith.select %23, %27, %20 : vector<8x8xi1>, vector<8x8xf32>
    %29 = vector.shape_cast %26 : vector<8x8xf32> to vector<8x8x1xf32>
    %cst_12 = arith.constant 2.000000e-01 : f32
    %30 = vector.broadcast %cst_12 : f32 to vector<8x8x1xf32>
    %31 = arith.addf %30, %29 : vector<8x8x1xf32>
    %32 = vector.shape_cast %28 : vector<8x8xf32> to vector<8x1x8xf32>
    %33 = vector.broadcast %31 : vector<8x8x1xf32> to vector<8x8x8xf32>
    %34 = vector.broadcast %32 : vector<8x1x8xf32> to vector<8x8x8xf32>
    %35 = arith.subf %33, %34 : vector<8x8x8xf32>
    %cst_13 = arith.constant 0.000000e+00 : f32
    %36 = vector.broadcast %cst_13 : f32 to vector<8x8x8xf32>
    %37 = arith.maximumf %35, %36 : vector<8x8x8xf32>
    %38 = vector.shape_cast %37 : vector<8x8x8xf32> to vector<1x8x8x8xf32>
    %cst_14 = arith.constant dense<0.000000e+00> : vector<1xf32>
    %39 = vector.multi_reduction <add>, %38, %cst_14 [1, 2, 3] : vector<1x8x8x8xf32> to vector<1xf32>
    %40 = vector.shape_cast %39 : vector<1xf32> to vector<1x1x1x1xf32>
    %41 = vector.extract %40[0, 0, 0, 0] : f32 from vector<1x1x1x1xf32>
    %cst_15 = arith.constant 0.000000e+00 : f32
    %42 = vector.broadcast %cst_15 : f32 to vector<8x8x8xf32>
    %43 = arith.cmpf ogt, %37, %42 : vector<8x8x8xf32>
    %44 = arith.extui %43 : vector<8x8x8xi1> to vector<8x8x8xi32>
    %45 = arith.sitofp %44 : vector<8x8x8xi32> to vector<8x8x8xf32>
    %46 = vector.shape_cast %45 : vector<8x8x8xf32> to vector<1x8x8x8xf32>
    %cst_16 = arith.constant dense<0.000000e+00> : vector<1xf32>
    %47 = vector.multi_reduction <add>, %46, %cst_16 [1, 2, 3] : vector<1x8x8x8xf32> to vector<1xf32>
    %48 = vector.shape_cast %47 : vector<1xf32> to vector<1x1x1x1xf32>
    %49 = vector.extract %48[0, 0, 0, 0] : f32 from vector<1x1x1x1xf32>
    %cst_17 = arith.constant 1.000000e+00 : f32
    %50 = arith.maximumf %49, %cst_17 : f32
    %51 = arith.divf %41, %50 : f32
    %52 = vector.broadcast %51 : f32 to vector<1x1x1xf32>
    %c0_18 = arith.constant 0 : index
    %c0_19 = arith.constant 0 : index
    %c0_20 = arith.constant 0 : index
    %53 = vector.load %arg4[%c0_18, %c0_19, %c0_20] : memref<1x1x1xf32, #tpu.memory_space<vmem>>, vector<1x1x1xf32>
    tpu.vector_store %arg4[%c0_18, %c0_19, %c0_20], %52 {strides = array<i32>} : memref<1x1x1xf32, #tpu.memory_space<vmem>>, vector<1x1x1xf32>,
    %54 = vector.extract_strided_slice %20 {offsets = [2, 0], sizes = [6, 2], strides = [1, 1]} : vector<8x8xf32> to vector<6x2xf32>
    %55 = vector.shape_cast %54 : vector<6x2xf32> to vector<1x6x2xf32>
    %c0_21 = arith.constant 0 : index
    %c0_22 = arith.constant 0 : index
    %c0_23 = arith.constant 0 : index
    %56 = vector.load %arg3[%c0_21, %c0_22, %c0_23] : memref<1x6x2xf32, #tpu.memory_space<vmem>>, vector<1x6x2xf32>
    tpu.vector_store %arg3[%c0_21, %c0_22, %c0_23], %55 {strides = array<i32>} : memref<1x6x2xf32, #tpu.memory_space<vmem>>, vector<1x6x2xf32>,
    return
  }
  func.func @transform_0(%arg0: i32) -> (i32, i32, i32) {
    %c0_i32 = arith.constant 0 : i32
    %c0_i32_0 = arith.constant 0 : i32
    %c0_i32_1 = arith.constant 0 : i32
    return %arg0, %c0_i32, %c0_i32_0 : i32, i32, i32
  }
  func.func @transform_1(%arg0: i32) -> (i32, i32) {
    %c0_i32 = arith.constant 0 : i32
    %c0_i32_0 = arith.constant 0 : i32
    %c0_i32_1 = arith.constant 0 : i32
    return %c0_i32, %c0_i32_0 : i32, i32
  }
  func.func @transform_2(%arg0: i32) -> (i32, i32, i32) {
    %c0_i32 = arith.constant 0 : i32
    %c0_i32_0 = arith.constant 0 : i32
    %c0_i32_1 = arith.constant 0 : i32
    return %arg0, %c0_i32, %c0_i32_0 : i32, i32, i32
  }
  func.func @transform_3(%arg0: i32) -> (i32, i32, i32) {
    %c0_i32 = arith.constant 0 : i32
    %c0_i32_0 = arith.constant 0 : i32
    %c0_i32_1 = arith.constant 0 : i32
    return %arg0, %c0_i32, %c0_i32_0 : i32, i32, i32
  }
}

</mosaic_0001>

<llo_original>
// kernel: tpu_custom_call.1
$region0: #{tpu_custom_call.1}
  #allocation0 [shape = 'u32[]', space=smem, size = 0x4, offset = 0x4, fixed_abs, tag = 'smem constant byte address 0x4 - core index']
  #allocation1 [shape = 'u32[144,128]{1,0:T(1,128)}', space=vmem, size = 0x12000, scoped, tag = 'internal scratch']
  %s0 = inlined_call_operand.hbm [shape: f32[2,8,32], index: 0, kind: input, shape index: {}]
  %s1 = inlined_call_operand.hbm [shape: f32[8,8], index: 1, kind: input, shape index: {}]
  %s2 = inlined_call_operand.vmem [shape: f32[2,6,2], index: 2, kind: output, shape index: {0}]
  %s3 = inlined_call_operand.vmem [shape: f32[2,1,1], index: 3, kind: output, shape index: {1}]
  %4 = xla_tuple %s2, %s3
  %s5 = sld [smem:[#allocation0]]
  $region57: #{tpu_custom_call.1} parent=0
    _
  %s7 = ssub.s32 1, %s5
  %s8 = scalar_select 0, %s7, %s5
  $region1: #{tpu_custom_call.1} parent=0
    #allocation2 [shape = 'u8[8192]{0}', space=vmem, size = 0x2000, scoped, tag = 'input window, operand 0']
    #allocation3 [shape = 's32[2]{0}', space=sflag, size = 0x8, scoped, tag = 'scoped memory for tpu_custom_call.1']
    #allocation4 [shape = 'u8[4096]{0}', space=vmem, size = 0x1000, scoped, tag = 'input window, operand 1, single buffered']
    #allocation5 [shape = 's32[1]{0}', space=sflag, size = 0x4, scoped, tag = 'scoped memory for tpu_custom_call.1']
    %9 = vsyncpa [#allocation3], 0
    %s10 = scalar_lea.sflag [#allocation3], 1
    %11 = vsyncpa %s10, 0
    %12 = vsyncpa [#allocation5], 0
    loop: start=0, step=1, limit=4
    $region2: #{tpu_custom_call.1} parent=1 // loop_pre_header
      _
    $region3: #{tpu_custom_call.1} parent=1 // loop_header
      %s14 = sphi 0, %s18
      %p15 = scmp.ge.s32.totalorder %s14, 4
      %s24 = sphi 0, %s26
      %s27 = sphi 0, %s24
      %s28 = sphi 0, %s27
      %s44 = sphi 0, %s28
      %s48 = sphi 0, %s48
      %s50 = sphi 0, %s48
      %s51 = sphi 0, %s50
      %s65 = sphi 0, %s51
      %s71 = sphi 0, %s73
      %s74 = sphi 0, %s71
      %s75 = sphi 0, %s74
      %s91 = sphi 0, %s75
      %s97 = sphi 0, %s99
      %s100 = sphi 0, %s97
      %s101 = sphi 0, %s100
      %s117 = sphi 0, %s101
    $region4: #{tpu_custom_call.1} parent=1 // loop_header_branch
      %17 = sbr.rel (%p15) target = $region8
    $region5: #{tpu_custom_call.1} parent=1 // loop_body
      %s19 = ssub.s32 %s14, 1
      %s20 = ssub.s32 %s14, 2
      %s21 = sadd.s32 %s14, 1
      %s22 = ssub.s32 %s14, %s21
      %p23 = scmp.eq.s32.totalorder %s22, 0
      %s25 = sadd.s32 %s24, 1
      %s26 = scalar_select %p23, %s24, %s25
      %p29 = pneg %p23
      %p30 = scmp.eq.s32.totalorder %s14, 1
      %p31 = por %p29, %p30
      %p32 = scmp.ne.s32.totalorder %s24, %s27
      %p33 = scmp.eq.s32.totalorder %s14, 0
      %p34 = por %p32, %p33
      %p35 = scmp.ne.s32.totalorder %s24, %s27
      %p36 = scmp.eq.s32.totalorder %s19, 1
      %p37 = por %p35, %p36
      %p38 = scmp.ne.s32.totalorder %s27, %s28
      %p39 = scmp.eq.s32.totalorder %s19, 0
      %p40 = por %p38, %p39
      %p41 = scmp.ne.s32.totalorder %s27, %s28
      %p42 = scmp.eq.s32.totalorder %s20, 1
      %p43 = por %p41, %p42
      %p45 = scmp.ne.s32.totalorder %s28, %s44
      %p46 = scmp.eq.s32.totalorder %s20, 0
      %p47 = por %p45, %p46
      %s49 = sadd.s32 %s48, 1
      %p52 = scmp.eq.s32.totalorder %s14, 1
      %p53 = scmp.ne.s32.totalorder %s48, %s50
      %p54 = scmp.eq.s32.totalorder %s14, 0
      %p55 = por %p53, %p54
      %p56 = scmp.ne.s32.totalorder %s48, %s50
      %p57 = scmp.eq.s32.totalorder %s19, 1
      %p58 = por %p56, %p57
      %p59 = scmp.ne.s32.totalorder %s50, %s51
      %p60 = scmp.eq.s32.totalorder %s19, 0
      %p61 = por %p59, %p60
      %p62 = scmp.ne.s32.totalorder %s50, %s51
      %p63 = scmp.eq.s32.totalorder %s20, 1
      %p64 = por %p62, %p63
      %p66 = scmp.ne.s32.totalorder %s51, %s65
      %p67 = scmp.eq.s32.totalorder %s20, 0
      %p68 = por %p66, %p67
      %s69 = ssub.s32 %s14, %s21
      %p70 = scmp.eq.s32.totalorder %s69, 0
      %s72 = sadd.s32 %s71, 1
      %s73 = scalar_select %p70, %s71, %s72
      %p76 = pneg %p70
      %p77 = scmp.eq.s32.totalorder %s14, 1
      %p78 = por %p76, %p77
      %p79 = scmp.ne.s32.totalorder %s71, %s74
      %p80 = scmp.eq.s32.totalorder %s14, 0
      %p81 = por %p79, %p80
      %p82 = scmp.ne.s32.totalorder %s71, %s74
      %p83 = scmp.eq.s32.totalorder %s19, 1
      %p84 = por %p82, %p83
      %p85 = scmp.ne.s32.totalorder %s74, %s75
      %p86 = scmp.eq.s32.totalorder %s19, 0
      %p87 = por %p85, %p86
      %p88 = scmp.ne.s32.totalorder %s74, %s75
      %p89 = scmp.eq.s32.totalorder %s20, 1
      %p90 = por %p88, %p89
      %p92 = scmp.ne.s32.totalorder %s75, %s91
      %p93 = scmp.eq.s32.totalorder %s20, 0
      %p94 = por %p92, %p93
      %s95 = ssub.s32 %s14, %s21
      %p96 = scmp.eq.s32.totalorder %s95, 0
      %s98 = sadd.s32 %s97, 1
      %s99 = scalar_select %p96, %s97, %s98
      %p102 = pneg %p96
      %p103 = scmp.eq.s32.totalorder %s14, 1
      %p104 = por %p102, %p103
      %p105 = scmp.ne.s32.totalorder %s97, %s100
      %p106 = scmp.eq.s32.totalorder %s14, 0
      %p107 = por %p105, %p106
      %p108 = scmp.ne.s32.totalorder %s97, %s100
      %p109 = scmp.eq.s32.totalorder %s19, 1
      %p110 = por %p108, %p109
      %p111 = scmp.ne.s32.totalorder %s100, %s101
      %p112 = scmp.eq.s32.totalorder %s19, 0
      %p113 = por %p111, %p112
      %p114 = scmp.ne.s32.totalorder %s100, %s101
      %p115 = scmp.eq.s32.totalorder %s20, 1
      %p116 = por %p114, %p115
      %p118 = scmp.ne.s32.totalorder %s101, %s117
      %p119 = scmp.eq.s32.totalorder %s20, 0
      %p120 = por %p118, %p119
      %p121 = scmp.le.s32.totalorder 1, %s14
      %p122 = scmp.lt.s32.totalorder %s14, 3
      %p123 = pnand %p121, %p122
      %p124 = pneg %p123
      // Predicated region
      $region9: #{tpu_custom_call.1} parent=5 // pred_check
        _
      $region10: #{tpu_custom_call.1} parent=5 // pred_check_branch
        %126 = sbr.rel (%p123) target = $region12
      $region11: #{tpu_custom_call.1} parent=5 // pred_region
        %s127 = ssub.s32 %s14, 1
        // Predicated region
        $region13: #{tpu_custom_call.1} parent=11 // pred_check
          %p128 = pneg %p61
        $region14: #{tpu_custom_call.1} parent=11 // pred_check_branch
          %130 = sbr.rel (%p128) target = $region16
        $region15: #{tpu_custom_call.1} parent=11 // pred_region
          %s132 = ssub.s32 128, 128
          %133 = vsyncadd [#allocation5], %s132
          %s135 = sshll.u32 [#allocation4], 4
          %s136 = int_to_ptr.vmem [resolvable:$true] %s135
          %138 = dma.hbm_to_vmem [thread:$0]  %s1, 128, %s136, [#allocation5]
        $region16: #{tpu_custom_call.1} parent=11 // pred_fallthru
          _
      $region12: #{tpu_custom_call.1} parent=5 // pred_fallthru
        _
      %p139 = scmp.lt.s32.totalorder %s14, 2
      // Predicated region
      $region17: #{tpu_custom_call.1} parent=5 // pred_check
        %p140 = pneg %p139
      $region18: #{tpu_custom_call.1} parent=5 // pred_check_branch
        %142 = sbr.rel (%p140) target = $region20
      $region19: #{tpu_custom_call.1} parent=5 // pred_region
        // Predicated region
        $region21: #{tpu_custom_call.1} parent=19 // pred_check
          %p143 = pneg %p34
        $region22: #{tpu_custom_call.1} parent=19 // pred_check_branch
          %145 = sbr.rel (%p143) target = $region24
        $region23: #{tpu_custom_call.1} parent=19 // pred_region
          %s146 = sand.u32 %s24, 1
          %s147 = scalar_lea.sflag [#allocation3], %s146
          %s148 = sand.u32 %s24, 1
          %s149 = smul.addr %s148, 8
          %s150 = scalar_lea.vmem [#allocation2], %s149
          %s152 = ssub.s32 128, 128
          %153 = vsyncadd %s147, %s152
          %s154 = smul.addr %s14, 128
          %s155 = scalar_lea.hbm %s0, %s154
          %s157 = sshll.u32 %s150, 4
          %s158 = int_to_ptr.vmem [resolvable:$true] %s157
          %160 = dma.hbm_to_vmem [thread:$0]  %s155, 128, %s158, %s147
        $region24: #{tpu_custom_call.1} parent=19 // pred_fallthru
          _
      $region20: #{tpu_custom_call.1} parent=5 // pred_fallthru
        _
      %p161 = scmp.le.s32.totalorder 1, %s14
      %p162 = scmp.lt.s32.totalorder %s14, 3
      %p163 = pnand %p161, %p162
      %p164 = pneg %p163
      // Predicated region
      $region25: #{tpu_custom_call.1} parent=5 // pred_check
        _
      $region26: #{tpu_custom_call.1} parent=5 // pred_check_branch
        %166 = sbr.rel (%p163) target = $region28
      $region27: #{tpu_custom_call.1} parent=5 // pred_region
        %s167 = ssub.s32 %s14, 1
        %s168 = sand.u32 %s27, 1
        %s169 = scalar_lea.sflag [#allocation3], %s168
        %s170 = sand.u32 %s27, 1
        %s171 = smul.addr %s170, 8
        %s172 = scalar_lea.vmem [#allocation2], %s171
        // Predicated region
        $region29: #{tpu_custom_call.1} parent=27 // pred_check
          %p173 = pneg %p40
        $region30: #{tpu_custom_call.1} parent=27 // pred_check_branch
          %175 = sbr.rel (%p173) target = $region32
        $region31: #{tpu_custom_call.1} parent=27 // pred_region
          %176 = dma.done %s169, 128
        $region32: #{tpu_custom_call.1} parent=27 // pred_fallthru
          _
        // Predicated region
        $region33: #{tpu_custom_call.1} parent=27 // pred_check
          %p177 = pneg %p61
        $region34: #{tpu_custom_call.1} parent=27 // pred_check_branch
          %179 = sbr.rel (%p177) target = $region36
        $region35: #{tpu_custom_call.1} parent=27 // pred_region
          %180 = dma.done [#allocation5], 128
        $region36: #{tpu_custom_call.1} parent=27 // pred_fallthru
          _
        %s181 = sand.u32 %s27, 1
        %s182 = scalar_lea.sflag [#allocation3], %s181
        %s183 = sand.u32 %s27, 1
        %s184 = smul.addr %s183, 8
        %s185 = scalar_lea.vmem [#allocation2], %s184
        %p186 = pneg %p40
        %p187 = pneg %p37
        %p188 = pneg %p61
        %p189 = pneg %p58
        %p190 = pneg %p87
        %p191 = pneg %p84
        %p192 = scmp.lt.s32.totalorder %s19, 1
        %s193 = scalar_select %p192, %s19, 1
        %s194 = smul.addr %s193, 8
        %s195 = scalar_lea.vmem %s2, %s194
        %p196 = pneg %p113
        %p197 = pneg %p110
        %p198 = scmp.lt.s32.totalorder %s19, 1
        %s199 = scalar_select %p198, %s19, 1
        %s200 = scalar_lea.vmem %s3, %s199
        %p201 = scmp.lt.s32.totalorder %s19, 1
        %s202 = scalar_select %p201, %s19, 1
        %s203 = smul.addr %s202, 8
        %s204 = scalar_lea.vmem %s2, %s203
        %p205 = scmp.lt.s32.totalorder %s19, 1
        %s206 = scalar_select %p205, %s19, 1
        %s207 = scalar_lea.vmem %s3, %s206
        %v208 = vld [vmem:[%s172] sm:$0xff]
        %vm209 = vcmask 261120
        %v211 = vsel %vm209, %v208, 0
        %213 = vmatprep.subr.mxu0 0.0
        %214 = vmatpush1.xpose.msra.mxu0 0.0
        %215 = vmatprep.subr.mxu0 0.0
        %216 = vmatpush1.xpose.msra.mxu0 0.0
        %217 = vmatprep.subr.mxu0 0.0
        %218 = vmatpush1.xpose.msra.mxu0 0.0
        %219 = vmatprep.subr.mxu0 0.0
        %220 = vmatpush1.xpose.msra.mxu0 0.0
        %221 = vmatprep.subr.mxu0 0.0
        %222 = vmatpush1.xpose.msra.mxu0 0.0
        %223 = vmatprep.subr.mxu0 0.0
        %224 = vmatpush1.xpose.msra.mxu0 0.0
        %225 = vmatprep.subr.mxu0 0.0
        %226 = vmatpush1.xpose.msra.mxu0 0.0
        %227 = vmatprep.subr.mxu0 0.0
        %228 = vmatpush1.xpose.msra.mxu0 0.0
        %229 = vmatprep.subr.mxu0 0.0
        %230 = vmatpush1.xpose.msra.mxu0 0.0
        %231 = vmatprep.subr.mxu0 0.0
        %232 = vmatpush1.xpose.msra.mxu0 0.0
        %233 = vmatprep.subr.mxu0 0.0
        %234 = vmatpush1.xpose.msra.mxu0 0.0
        %235 = vmatprep.subr.mxu0 0.0
        %236 = vmatpush1.xpose.msra.mxu0 0.0
        %237 = vmatprep.subr.mxu0 0.0
        %238 = vmatpush1.xpose.msra.mxu0 0.0
        %239 = vmatprep.subr.mxu0 0.0
        %240 = vmatpush1.xpose.msra.mxu0 0.0
        %241 = vmatprep.subr.mxu0 0.0
        %242 = vmatpush1.xpose.msra.mxu0 0.0
        %243 = vmatprep.subr.mxu0 0.0
        %244 = vmatpush1.xpose.msra.mxu0 %v211
        %245 = vmatprep.subr.mxu0 0.0
        %246 = vmatpush2.xpose.msra.mxu0 0.0
        %247 = vmatprep.subr.mxu0 0.0
        %248 = vmatpush2.xpose.msra.mxu0 0.0
        %249 = vmatprep.subr.mxu0 0.0
        %250 = vmatpush2.xpose.msra.mxu0 0.0
        %251 = vmatprep.subr.mxu0 0.0
        %252 = vmatpush2.xpose.msra.mxu0 0.0
        %253 = vmatprep.subr.mxu0 0.0
        %254 = vmatpush2.xpose.msra.mxu0 0.0
        %255 = vmatprep.subr.mxu0 0.0
        %256 = vmatpush2.xpose.msra.mxu0 0.0
        %257 = vmatprep.subr.mxu0 0.0
        %258 = vmatpush2.xpose.msra.mxu0 0.0
        %259 = vmatprep.subr.mxu0 0.0
        %260 = vmatpush2.xpose.msra.mxu0 0.0
        %261 = vmatprep.subr.mxu0 0.0
        %262 = vmatpush2.xpose.msra.mxu0 0.0
        %263 = vmatprep.subr.mxu0 0.0
        %264 = vmatpush2.xpose.msra.mxu0 0.0
        %265 = vmatprep.subr.mxu0 0.0
        %266 = vmatpush2.xpose.msra.mxu0 0.0
        %267 = vmatprep.subr.mxu0 0.0
        %268 = vmatpush2.xpose.msra.mxu0 0.0
        %269 = vmatprep.subr.mxu0 0.0
        %270 = vmatpush2.xpose.msra.mxu0 0.0
        %271 = vmatprep.subr.mxu0 0.0
        %272 = vmatpush2.xpose.msra.mxu0 0.0
        %273 = vmatprep.subr.mxu0 0.0
        %274 = vmatpush2.xpose.msra.mxu0 0.0
        %275 = vmatprep.subr.mxu0 0.0
        %276 = vmatpush2.xpose.msra.mxu0 0.0
        %277 = vmatprep.mubr.f32.mxu0 0.0
        %278 = vmatmul.mubr.f32.gmra.mxu0 %v211
        %v279 = vpop.f32.mrf.mxu0
        %v280 = vadd.f32 0.0, %v279
        %v281 = vpop.f32.mrf.mxu0
        %282 = vdwg.mxu0
        %v283 = vmul.f32 %v208, %v208
        %v284 = vsel %vm209, %v283, 0.0
        %285 = vadd.xlane.f32.xlu0 %v284
        %v286 = vpop.xlane.xlu0 %285
        %287 = vxpose.xlu0.b32.start [1/16] %v286, 128
        %288 = vxpose.xlu0.b32.cont [2/16] 0.0, 128
        %289 = vxpose.xlu0.b32.cont [3/16] 0.0, 128
        %290 = vxpose.xlu0.b32.cont [4/16] 0.0, 128
        %291 = vxpose.xlu0.b32.cont [5/16] 0.0, 128
        %292 = vxpose.xlu0.b32.cont [6/16] 0.0, 128
        %293 = vxpose.xlu0.b32.cont [7/16] 0.0, 128
        %294 = vxpose.xlu0.b32.cont [8/16] 0.0, 128
        %295 = vxpose.xlu0.b32.cont [9/16] 0.0, 128
        %296 = vxpose.xlu0.b32.cont [10/16] 0.0, 128
        %297 = vxpose.xlu0.b32.cont [11/16] 0.0, 128
        %298 = vxpose.xlu0.b32.cont [12/16] 0.0, 128
        %299 = vxpose.xlu0.b32.cont [13/16] 0.0, 128
        %300 = vxpose.xlu0.b32.cont [14/16] 0.0, 128
        %301 = vxpose.xlu0.b32.cont [15/16] 0.0, 128
        %302 = vxpose.xlu0.b32.end [16/16] 0.0, 128
        %v303 = vpop.trf.xlu0
        %v304 = vpop.trf.xlu0
        %v305 = vpop.trf.xlu0
        %v306 = vpop.trf.xlu0
        %v307 = vpop.trf.xlu0
        %v308 = vpop.trf.xlu0
        %v309 = vpop.trf.xlu0
        %v310 = vpop.trf.xlu0
        %v311 = vpop.trf.xlu0
        %v312 = vpop.trf.xlu0
        %v313 = vpop.trf.xlu0
        %v314 = vpop.trf.xlu0
        %v315 = vpop.trf.xlu0
        %v316 = vpop.trf.xlu0
        %v317 = vpop.trf.xlu0
        %v318 = vpop.trf.xlu0
        %v319 = vlaneseq
        %v320 = vshrl.u32 %v319, 7
        %v321 = vsub.s32 0, %v320
        %v322 = vrot.slane %v303, %v321
        %v323 = vadd.f32 %v286, %v322
        %v324 = vmul.f32 %v280, 2.0
        %v325 = vsub.f32 %v323, %v324
        %v326 = vmax.f32 %v325, 0.0
        %v327 = vlaneseq
        %v328 = vshrl.u32 %v327, 7
        %v329 = vlaneseq
        %v330 = vand.u32 %v329, 127
        %vm331 = vcmp.eq.s32.totalorder %v328, %v330
        %v332 = vsel %vm331, 0.0, %v326
        %v333 = vrsqrt.pop %v332
        %v334 = vmul.f32 %v332, %v333
        %vm335 = vcmp.eq.f32.partialorder %v332, inf
        %v336 = vsel %vm335, %v332, %v334
        %vm337 = vcmp.eq.f32.partialorder %v332, 0.0
        %v338 = vand.u32 %v332, 2147483648
        %v339 = vsel %vm337, %v338, %v336
        %v340 = vld [vmem:[#allocation4] sm:$0xff]
        %vm341 = vcmp.gt.f32.partialorder %v340, 0.0
        %v342 = vsel %vm341, %v339, -1e+09
        %v343 = vsel %vm341, 1e+09, %v339
        %v344 = vlaneseq
        %v345 = vshrl.u32 %v344, 7
        %v346 = vsub.s32 0, %v345
        %v347 = vrot.slane %v342, %v346
        %349 = vbcast.lane.b32.xlu0 %v347, 256
        %v350 = vpop.permute.xlu0 %349
        %v351 = vlaneseq
        %v352 = vshrl.u32 %v351, 7
        %v353 = vsub.s32 1, %v352
        %v354 = vrot.slane %v342, %v353
        %356 = vbcast.lane.b32.xlu0 %v354, 256
        %v357 = vpop.permute.xlu0 %356
        %v358 = vlaneseq
        %v359 = vshrl.u32 %v358, 7
        %v360 = vsub.s32 2, %v359
        %v361 = vrot.slane %v342, %v360
        %363 = vbcast.lane.b32.xlu0 %v361, 256
        %v364 = vpop.permute.xlu0 %363
        %v365 = vlaneseq
        %v366 = vshrl.u32 %v365, 7
        %v367 = vsub.s32 3, %v366
        %v368 = vrot.slane %v342, %v367
        %370 = vbcast.lane.b32.xlu0 %v368, 256
        %v371 = vpop.permute.xlu0 %370
        %v372 = vlaneseq
        %v373 = vshrl.u32 %v372, 7
        %v374 = vsub.s32 4, %v373
        %v375 = vrot.slane %v342, %v374
        %377 = vbcast.lane.b32.xlu0 %v375, 256
        %v378 = vpop.permute.xlu0 %377
        %v379 = vlaneseq
        %v380 = vshrl.u32 %v379, 7
        %v381 = vsub.s32 5, %v380
        %v382 = vrot.slane %v342, %v381
        %384 = vbcast.lane.b32.xlu0 %v382, 256
        %v385 = vpop.permute.xlu0 %384
        %v386 = vlaneseq
        %v387 = vshrl.u32 %v386, 7
        %v388 = vsub.s32 6, %v387
        %v389 = vrot.slane %v342, %v388
        %391 = vbcast.lane.b32.xlu0 %v389, 256
        %v392 = vpop.permute.xlu0 %391
        %v393 = vlaneseq
        %v394 = vshrl.u32 %v393, 7
        %v395 = vsub.s32 7, %v394
        %v396 = vrot.slane %v342, %v395
        %398 = vbcast.lane.b32.xlu0 %v396, 256
        %v399 = vpop.permute.xlu0 %398
        %v400 = vadd.f32 %v350, 0.2
        %v401 = vadd.f32 %v357, 0.2
        %v402 = vadd.f32 %v364, 0.2
        %v403 = vadd.f32 %v371, 0.2
        %v404 = vadd.f32 %v378, 0.2
        %v405 = vadd.f32 %v385, 0.2
        %v406 = vadd.f32 %v392, 0.2
        %v407 = vadd.f32 %v399, 0.2
        %v409 = vcombine.high %v343, %v343
        %v411 = vunpack.c.l.s4 1966171168
        %v412 = vunpack.c.0.s8 %v411
        %v413 = vlaneseq
        %v414 = vshrl.u32 %v413, 7
        %v415 = vsub.s32 %v412, %v414
        %v416 = vrot.slane %v343, %v415
        %v418 = vunpack.c.l.s4 1966171168
        %v419 = vunpack.c.0.s8 %v418
        %v420 = vlaneseq
        %v421 = vshrl.u32 %v420, 7
        %v422 = vsub.s32 %v419, %v421
        %v423 = vrot.slane %v409, %v422
        %v424 = vcombine.high %v416, %v416
        %v425 = vcombine.high %v423, %v423
        %v427 = vunpack.c.l.s4 1966171168
        %v428 = vunpack.c.0.s8 %v427
        %v429 = vlaneseq
        %v430 = vshrl.u32 %v429, 7
        %v431 = vsub.s32 %v428, %v430
        %v432 = vrot.slane %v416, %v431
        %v434 = vunpack.c.l.s4 1966171168
        %v435 = vunpack.c.0.s8 %v434
        %v436 = vlaneseq
        %v437 = vshrl.u32 %v436, 7
        %v438 = vsub.s32 %v435, %v437
        %v439 = vrot.slane %v423, %v438
        %v441 = vunpack.c.l.s4 1966171168
        %v442 = vunpack.c.0.s8 %v441
        %v443 = vlaneseq
        %v444 = vshrl.u32 %v443, 7
        %v445 = vsub.s32 %v442, %v444
        %v446 = vrot.slane %v424, %v445
        %v448 = vunpack.c.l.s4 1966171168
        %v449 = vunpack.c.0.s8 %v448
        %v450 = vlaneseq
        %v451 = vshrl.u32 %v450, 7
        %v452 = vsub.s32 %v449, %v451
        %v453 = vrot.slane %v425, %v452
        %v454 = vcombine.high %v432, %v432
        %v455 = vcombine.high %v439, %v439
        %v456 = vcombine.high %v446, %v446
        %v457 = vcombine.high %v453, %v453
        %v458 = vlaneseq
        %v459 = vshrl.u32 %v458, 7
        %v460 = vsub.s32 0, %v459
        %v461 = vrot.slane %v432, %v460
        %v462 = vlaneseq
        %v463 = vshrl.u32 %v462, 7
        %v464 = vsub.s32 0, %v463
        %v465 = vrot.slane %v446, %v464
        %v466 = vlaneseq
        %v467 = vshrl.u32 %v466, 7
        %v468 = vsub.s32 0, %v467
        %v469 = vrot.slane %v454, %v468
        %v470 = vlaneseq
        %v471 = vshrl.u32 %v470, 7
        %v472 = vsub.s32 0, %v471
        %v473 = vrot.slane %v456, %v472
        %v474 = vlaneseq
        %v475 = vshrl.u32 %v474, 7
        %v476 = vsub.s32 0, %v475
        %v477 = vrot.slane %v439, %v476
        %v478 = vlaneseq
        %v479 = vshrl.u32 %v478, 7
        %v480 = vsub.s32 0, %v479
        %v481 = vrot.slane %v453, %v480
        %v482 = vlaneseq
        %v483 = vshrl.u32 %v482, 7
        %v484 = vsub.s32 0, %v483
        %v485 = vrot.slane %v455, %v484
        %v486 = vlaneseq
        %v487 = vshrl.u32 %v486, 7
        %v488 = vsub.s32 0, %v487
        %v489 = vrot.slane %v457, %v488
        %v498 = vsub.f32 %v400, %v461
        %v499 = vsub.f32 %v401, %v465
        %v500 = vsub.f32 %v402, %v469
        %v501 = vsub.f32 %v403, %v473
        %v502 = vsub.f32 %v404, %v477
        %v503 = vsub.f32 %v405, %v481
        %v504 = vsub.f32 %v406, %v485
        %v505 = vsub.f32 %v407, %v489
        %v506 = vmax.f32 %v498, 0.0
        %v507 = vmax.f32 %v499, 0.0
        %v508 = vmax.f32 %v500, 0.0
        %v509 = vmax.f32 %v501, 0.0
        %v510 = vmax.f32 %v502, 0.0
        %v511 = vmax.f32 %v503, 0.0
        %v512 = vmax.f32 %v504, 0.0
        %v513 = vmax.f32 %v505, 0.0
        %vm514 = vcmask 64512
        %v515 = vsel %vm514, %v506, 0.0
        %v516 = vsel %vm514, %v507, 0.0
        %v517 = vadd.f32 %v515, %v516
        %v518 = vsel %vm514, %v508, 0.0
        %v519 = vadd.f32 %v517, %v518
        %v520 = vsel %vm514, %v509, 0.0
        %v521 = vadd.f32 %v519, %v520
        %v522 = vsel %vm514, %v510, 0.0
        %v523 = vadd.f32 %v521, %v522
        %v524 = vsel %vm514, %v511, 0.0
        %v525 = vadd.f32 %v523, %v524
        %v526 = vsel %vm514, %v512, 0.0
        %v527 = vadd.f32 %v525, %v526
        %v528 = vsel %vm514, %v513, 0.0
        %v529 = vadd.f32 %v527, %v528
        %530 = vadd.xlane.f32.xlu0 %v529
        %v531 = vpop.xlane.xlu0 %530
        %v532 = vrot.slane %v531, 4
        %v533 = vadd.f32 %v531, %v532
        %v534 = vrot.slane %v533, 2
        %v535 = vadd.f32 %v533, %v534
        %v536 = vrot.slane %v535, 1
        %v537 = vadd.f32 %v535, %v536
        %s538 = vtos %v537
        %vm539 = vcmp.gt.f32.partialorder %v506, 0.0
        %vm540 = vcmp.gt.f32.partialorder %v507, 0.0
        %vm541 = vcmp.gt.f32.partialorder %v508, 0.0
        %vm542 = vcmp.gt.f32.partialorder %v509, 0.0
        %vm543 = vcmp.gt.f32.partialorder %v510, 0.0
        %vm544 = vcmp.gt.f32.partialorder %v511, 0.0
        %vm545 = vcmp.gt.f32.partialorder %v512, 0.0
        %vm546 = vcmp.gt.f32.partialorder %v513, 0.0
        %v547 = vsel %vm539, 1, 0
        %v548 = vsel %vm540, 1, 0
        %v549 = vsel %vm541, 1, 0
        %v550 = vsel %vm542, 1, 0
        %v551 = vsel %vm543, 1, 0
        %v552 = vsel %vm544, 1, 0
        %v553 = vsel %vm545, 1, 0
        %v554 = vsel %vm546, 1, 0
        %v555 = vcvt.s32.f32 %v547
        %v556 = vcvt.s32.f32 %v548
        %v557 = vcvt.s32.f32 %v549
        %v558 = vcvt.s32.f32 %v550
        %v559 = vcvt.s32.f32 %v551
        %v560 = vcvt.s32.f32 %v552
        %v561 = vcvt.s32.f32 %v553
        %v562 = vcvt.s32.f32 %v554
        %v563 = vsel %vm514, %v555, 0.0
        %v564 = vsel %vm514, %v556, 0.0
        %v565 = vadd.f32 %v563, %v564
        %v566 = vsel %vm514, %v557, 0.0
        %v567 = vadd.f32 %v565, %v566
        %v568 = vsel %vm514, %v558, 0.0
        %v569 = vadd.f32 %v567, %v568
        %v570 = vsel %vm514, %v559, 0.0
        %v571 = vadd.f32 %v569, %v570
        %v572 = vsel %vm514, %v560, 0.0
        %v573 = vadd.f32 %v571, %v572
        %v574 = vsel %vm514, %v561, 0.0
        %v575 = vadd.f32 %v573, %v574
        %v576 = vsel %vm514, %v562, 0.0
        %v577 = vadd.f32 %v575, %v576
        %578 = vadd.xlane.f32.xlu0 %v577
        %v579 = vpop.xlane.xlu0 %578
        %v580 = vrot.slane %v579, 4
        %v581 = vadd.f32 %v579, %v580
        %v582 = vrot.slane %v581, 2
        %v583 = vadd.f32 %v581, %v582
        %v584 = vrot.slane %v583, 1
        %v585 = vadd.f32 %v583, %v584
        %s586 = vtos %v585
        %s587 = smax.f32 %s586, 1.0
        %v588 = vstv %s587
        %v589 = vrcp.pop %v588
        %s590 = vtos %v589
        %s591 = smul.f32 %s538, %s590
        %v592 = vstv %s591
        %vm593 = vcmask 0
        %594 = vst.msk [vmem:[%s207] sm:$0x1] %vm593, %v592
        %vm595 = vcmask 15362
        %596 = vst.msk [vmem:[%s204 - $0x2] sm:$0xfc] %vm595, %v339
        %p597 = scmp.lt.s32.totalorder %s19, 1
        %s598 = scalar_select %p597, %s19, 1
        %s599 = smul.addr %s598, 8
        %s600 = scalar_lea.vmem %s2, %s599
        %p601 = scmp.lt.s32.totalorder %s19, 1
        %s602 = scalar_select %p601, %s19, 1
        %s603 = scalar_lea.vmem %s3, %s602
        // Predicated region
        $region37: #{tpu_custom_call.1} parent=27 // pred_check
          %p604 = pneg %p84
        $region38: #{tpu_custom_call.1} parent=27 // pred_check_branch
          %606 = sbr.rel (%p604) target = $region40
        $region39: #{tpu_custom_call.1} parent=27 // pred_region
          _
        $region40: #{tpu_custom_call.1} parent=27 // pred_fallthru
          _
        // Predicated region
        $region41: #{tpu_custom_call.1} parent=27 // pred_check
          %p607 = pneg %p110
        $region42: #{tpu_custom_call.1} parent=27 // pred_check_branch
          %609 = sbr.rel (%p607) target = $region44
        $region43: #{tpu_custom_call.1} parent=27 // pred_region
          _
        $region44: #{tpu_custom_call.1} parent=27 // pred_fallthru
          _
      $region28: #{tpu_custom_call.1} parent=5 // pred_fallthru
        _
      %p610 = scmp.le.s32.totalorder 2, %s14
      // Predicated region
      $region45: #{tpu_custom_call.1} parent=5 // pred_check
        %p611 = pneg %p610
      $region46: #{tpu_custom_call.1} parent=5 // pred_check_branch
        %613 = sbr.rel (%p611) target = $region48
      $region47: #{tpu_custom_call.1} parent=5 // pred_region
        %s614 = ssub.s32 %s14, 2
        // Predicated region
        $region49: #{tpu_custom_call.1} parent=47 // pred_check
          %p615 = pneg %p90
        $region50: #{tpu_custom_call.1} parent=47 // pred_check_branch
          %617 = sbr.rel (%p615) target = $region52
        $region51: #{tpu_custom_call.1} parent=47 // pred_region
          %p618 = scmp.lt.s32.totalorder %s20, 1
          %s619 = scalar_select %p618, %s20, 1
          %s620 = smul.addr %s619, 8
          %s621 = scalar_lea.vmem %s2, %s620
        $region52: #{tpu_custom_call.1} parent=47 // pred_fallthru
          _
        // Predicated region
        $region53: #{tpu_custom_call.1} parent=47 // pred_check
          %p622 = pneg %p116
        $region54: #{tpu_custom_call.1} parent=47 // pred_check_branch
          %624 = sbr.rel (%p622) target = $region56
        $region55: #{tpu_custom_call.1} parent=47 // pred_region
          %p625 = scmp.lt.s32.totalorder %s20, 1
          %s626 = scalar_select %p625, %s20, 1
          %s627 = scalar_lea.vmem %s3, %s626
        $region56: #{tpu_custom_call.1} parent=47 // pred_fallthru
          _
      $region48: #{tpu_custom_call.1} parent=5 // pred_fallthru
        _
    $region6: #{tpu_custom_call.1} parent=1 // loop_footer
      %s18 = sadd.s32 1, %s14
    $region7: #{tpu_custom_call.1} parent=1 // loop_footer_branch
      %13 = sbr.rel target = $region3
    $region8: #{tpu_custom_call.1} parent=1 // loop_exit
      _
    %628 = vsyncpa [#allocation3], 1
    %s629 = scalar_lea.sflag [#allocation3], 1
    %630 = vsyncpa %s629, 1
    %631 = vsyncpa [#allocation5], 1

</llo_original>
